<compile_context>
chip_gen: v5e
topology: v5e:2x2
jax: 0.10.0
libtpu: 0.0.40
codegen_flags: <defaults>
</compile_context>

<pallas_src>
import functools

import jax
import jax.numpy as jnp
from jax.experimental import pallas as pl
from jax.experimental.pallas import tpu as pltpu


# --------------------------------------------------------------------------- #
# Kernel body
# --------------------------------------------------------------------------- #
def _if_kernel(dv_ref, v_ref, spike_ref, v_out_ref, *, v_threshold, v_reset):
    # Elementwise hot path: integrate, threshold, reset (select-based).
    v = v_ref[...] + dv_ref[...]
    fire = (v - v_threshold) > 0.0
    spike_ref[...] = jnp.where(fire, 1.0, 0.0).astype(spike_ref.dtype)
    v_out_ref[...] = jnp.where(fire, jnp.float32(v_reset), v)


# --------------------------------------------------------------------------- #
# Layout / tiling heuristics (all static, evaluated at trace time)
# --------------------------------------------------------------------------- #
_LANE_WIDTHS = (2048, 1024, 512, 256, 128)


def _choose_lane_width(total):
    """Pick a lane-dense row width.  Returns (L, needs_pad)."""
    for L in _LANE_WIDTHS:
        if total % L == 0:
            return L, False          # free bitcast reshape
    return 512, True                 # tail padding required (copy)


def _target_block_bytes():
    """Per-array block size target; generation-aware (bigger on v6e/v7x)."""
    try:
        kind = jax.devices()[0].device_kind.lower()
    except Exception:
        return 1 << 20
    if any(tag in kind for tag in ("v7", "7x", "v6", "6e")):
        return 2 << 20               # high HBM BW -> amortize per-step overhead
    return 1 << 20                   # v5e and older: 1 MiB already hides overhead


def _pick_tile_rows(rows_total, lane_width, target_block_bytes):
    """Rows per block: ~target bytes per f32 array, balanced blocks, >=2 blocks
    when possible (so a v7x megacore can shard the grid across both TCs)."""
    if rows_total <= 8:
        return rows_total                            # full-extent block
    bytes_per_row = lane_width * 4
    rows = max(8, target_block_bytes // bytes_per_row)
    if rows >= rows_total:
        if rows_total < 16:
            return rows_total                        # too small to split
        half = -(-rows_total // 2)
        return min(rows_total, -(-half // 8) * 8)    # 2 balanced blocks
    num_blocks = -(-rows_total // rows)
    if num_blocks > 1 and num_blocks % 2 == 1:
        num_blocks += 1                              # prefer even block count (2 TCs)
    rows = -(-rows_total // num_blocks)              # balance the ragged tail
    rows = -(-rows // 8) * 8                         # sublane-aligned
    return max(8, min(rows, rows_total))


# --------------------------------------------------------------------------- #
# pallas_call wrapper on the canonical (rows, L) slab
# --------------------------------------------------------------------------- #
def _if_pallas(dv2, v2, v_threshold, v_reset, spike_dtype, tile_rows):
    rows_total, lane_width = dv2.shape
    kernel = functools.partial(_if_kernel, v_threshold=v_threshold, v_reset=v_reset)
    spec = pl.BlockSpec((tile_rows, lane_width), lambda i: (i, 0))

    spike_bytes = jnp.dtype(spike_dtype).itemsize
    total = rows_total * lane_width
    bytes_per_elem = 4 + 4 + 4 + spike_bytes          # dv, v_in, v_out, spike
    block_elems = tile_rows * lane_width
    vmem_limit = min(48 << 20,
                     max(16 << 20, int(block_elems * bytes_per_elem * 2 * 1.5)))

    return pl.pallas_call(
        kernel,
        out_shape=(
            jax.ShapeDtypeStruct((rows_total, lane_width), spike_dtype),   # spike
            jax.ShapeDtypeStruct((rows_total, lane_width), jnp.float32),   # new v
        ),
        grid=(pl.cdiv(rows_total, tile_rows),),
        in_specs=[spec, spec],
        out_specs=(spec, spec),
        input_output_aliases={1: 1},                   # membrane state in place
        compiler_params=pltpu.CompilerParams(
            dimension_semantics=("parallel",),         # megacore sharding on v7x
            vmem_limit_bytes=vmem_limit,
        ),
        cost_estimate=pl.CostEstimate(                 # hint: memory-bound custom call
            flops=4 * total,
            transcendentals=0,
            bytes_accessed=total * bytes_per_elem,
        ),
    )(dv2, v2)


# --------------------------------------------------------------------------- #
# Public entry point: canonicalize layout, run kernel, restore shape
# --------------------------------------------------------------------------- #
def _if_impl(dv, v_state, v_threshold, v_reset, spike_dtype, tile_rows):
    orig_shape = dv.shape
    total = dv.size
    lane_width, needs_pad = _choose_lane_width(total)

    dv_f = dv.reshape(-1)
    v_f = v_state.reshape(-1)
    if needs_pad:
        padded = pl.cdiv(total, lane_width) * lane_width
        dv_f = jnp.pad(dv_f, (0, padded - total))
        v_f = jnp.pad(v_f, (0, padded - total))
        total_p = padded
    else:
        total_p = total

    rows_total = total_p // lane_width
    dv2 = dv_f.reshape(rows_total, lane_width)
    v2 = v_f.reshape(rows_total, lane_width)

    if tile_rows is None:
        tile_rows = _pick_tile_rows(rows_total, lane_width, _target_block_bytes())

    spike2, vnew2 = _if_pallas(dv2, v2, v_threshold, v_reset, spike_dtype, tile_rows)

    if needs_pad:
        spike = spike2.reshape(-1)[:total].reshape(orig_shape)
        v_new = vnew2.reshape(-1)[:total].reshape(orig_shape)
    else:
        spike = spike2.reshape(orig_shape)
        v_new = vnew2.reshape(orig_shape)
    return spike, v_new


# Fast path (numel % 128 == 0): pure bitcast reshapes, so donate v_state and
# update the membrane state strictly in place.  Pad path: inputs are copied
# anyway, so skip donation (avoids "donated buffer not usable" noise).
# TODO(synk): when spike_dtype == dv.dtype and the caller can donate dv, also
# alias dv -> spike to drop one NxD allocation per timestep.
_if_forward_donate = jax.jit(_if_impl, static_argnums=(2, 3, 4, 5), donate_argnums=(1,))
_if_forward_nodonate = jax.jit(_if_impl, static_argnums=(2, 3, 4, 5))


def if_forward(dv, v_state, *, v_threshold=1.0, v_reset=0.0,
               spike_dtype=jnp.bfloat16, tile_rows=None):
    """One IF-neuron step.  Returns (spike, new_v_state).

    spike is {0, 1}; bfloat16 by default (lossless, less HBM traffic).  Pass
    spike_dtype=jnp.float32 to match torch's .float() exactly.  On the fast path
    v_state is donated (updated in place) — do not reuse it after this call.
    """
    needs_pad = (dv.size % 128) != 0
    fn = _if_forward_nodonate if needs_pad else _if_forward_donate
    return fn(dv, v_state, float(v_threshold), float(v_reset), spike_dtype, tile_rows)


def if_reference(dv, v_state, v_threshold=1.0, v_reset=0.0):
    v = v_state + dv
    spike = (v - v_threshold > 0.0).astype(jnp.float32)
    v_new = (1.0 - spike) * v + spike * v_reset
    return spike, v_new


# --------------------------------------------------------------------------- #
# Demo / self-test
# --------------------------------------------------------------------------- #
if __name__ == "__main__":
    key = jax.random.PRNGKey(0)
    k1, k2 = jax.random.split(key)
    v_threshold, v_reset = 1.0, 0.0

    # Case 1: realistic GCN hidden width NOT a multiple of 128 -> exercises the
    # lane-dense flatten + tail-pad path (no donation).
    N1, D1 = 300, 100
    v_state1 = jnp.full((N1, D1), 0.0 - v_threshold, dtype=jnp.float32)  # reset('subtract')
    dv1 = jax.random.normal(k1, (N1, D1), dtype=jnp.float32) * 2.0
    ref_s1, ref_v1 = if_reference(dv1, v_state1, v_threshold, v_reset)
    s1, vn1 = if_forward(dv1, v_state1, v_threshold=v_threshold, v_reset=v_reset)

    # Case 2: numel divisible by 2048 -> free-reshape fast path, 2-block grid
    # (megacore-shardable), in-place membrane-state alias via donation.
    N2, D2 = 256, 384
    v_state2 = jnp.full((N2, D2), 0.0 - v_threshold, dtype=jnp.float32)
    dv2 = jax.random.normal(k2, (N2, D2), dtype=jnp.float32) * 2.0
    ref_s2, ref_v2 = if_reference(dv2, v_state2, v_threshold, v_reset)  # before donation
    s2, vn2 = if_forward(dv2, v_state2, v_threshold=v_threshold, v_reset=v_reset)

    jax.block_until_ready((s1, vn1, s2, vn2))

    assert jnp.allclose(s1.astype(jnp.float32), ref_s1), "case1 spike mismatch"
    assert jnp.allclose(vn1, ref_v1), "case1 membrane state mismatch"
    assert jnp.allclose(s2.astype(jnp.float32), ref_s2), "case2 spike mismatch"
    assert jnp.allclose(vn2, ref_v2), "case2 membrane state mismatch"

    print("KERNEL_OK")
</pallas_src>

<mosaic_0001>
module attributes {stable_mosaic.version = 11 : i64} {
  func.func @_if_kernel(%arg0: i32, %arg1: memref<32x512xf32, #tpu.memory_space<vmem>>, %arg2: memref<32x512xf32, #tpu.memory_space<vmem>>, %arg3: memref<32x512xbf16, #tpu.memory_space<vmem>>, %arg4: memref<32x512xf32, #tpu.memory_space<vmem>>) attributes {dimension_semantics = [#tpu.dimension_semantics<parallel>], iteration_bounds = array<i64: 2>, scalar_prefetch = 0 : i64, scratch_operands = 0 : i64, tpu.core_type = #tpu.core_type<tc>, window_params = [{transform_indices = @transform_0, window_bounds = array<i64: 32, 512>}, {transform_indices = @transform_1, window_bounds = array<i64: 32, 512>}, {transform_indices = @transform_2, window_bounds = array<i64: 32, 512>}, {transform_indices = @transform_3, window_bounds = array<i64: 32, 512>}]} {
    %c0 = arith.constant 0 : index
    %c0_0 = arith.constant 0 : index
    %0 = vector.load %arg2[%c0, %c0_0] : memref<32x512xf32, #tpu.memory_space<vmem>>, vector<32x512xf32>
    %c0_1 = arith.constant 0 : index
    %c0_2 = arith.constant 0 : index
    %1 = vector.load %arg1[%c0_1, %c0_2] : memref<32x512xf32, #tpu.memory_space<vmem>>, vector<32x512xf32>
    %2 = arith.addf %0, %1 : vector<32x512xf32>
    %cst = arith.constant 1.000000e+00 : f32
    %3 = vector.broadcast %cst : f32 to vector<32x512xf32>
    %4 = arith.subf %2, %3 : vector<32x512xf32>
    %cst_3 = arith.constant 0.000000e+00 : f32
    %5 = vector.broadcast %cst_3 : f32 to vector<32x512xf32>
    %6 = arith.cmpf ogt, %4, %5 : vector<32x512xf32>
    %cst_4 = arith.constant 1.000000e+00 : f32
    %cst_5 = arith.constant 0.000000e+00 : f32
    %7 = vector.broadcast %cst_4 : f32 to vector<32x512xf32>
    %8 = vector.broadcast %cst_5 : f32 to vector<32x512xf32>
    %9 = arith.select %6, %7, %8 : vector<32x512xi1>, vector<32x512xf32>
    %10 = arith.truncf %9 : vector<32x512xf32> to vector<32x512xbf16>
    %c0_6 = arith.constant 0 : index
    %c0_7 = arith.constant 0 : index
    %11 = vector.load %arg3[%c0_6, %c0_7] : memref<32x512xbf16, #tpu.memory_space<vmem>>, vector<32x512xbf16>
    tpu.vector_store %arg3[%c0_6, %c0_7], %10 {strides = array<i32>} : memref<32x512xbf16, #tpu.memory_space<vmem>>, vector<32x512xbf16>,
    %cst_8 = arith.constant 0.000000e+00 : f32
    %12 = vector.broadcast %cst_8 : f32 to vector<32x512xf32>
    %13 = arith.select %6, %12, %2 : vector<32x512xi1>, vector<32x512xf32>
    %c0_9 = arith.constant 0 : index
    %c0_10 = arith.constant 0 : index
    %14 = vector.load %arg4[%c0_9, %c0_10] : memref<32x512xf32, #tpu.memory_space<vmem>>, vector<32x512xf32>
    tpu.vector_store %arg4[%c0_9, %c0_10], %13 {strides = array<i32>} : memref<32x512xf32, #tpu.memory_space<vmem>>, vector<32x512xf32>,
    return
  }
  func.func @transform_0(%arg0: i32) -> (i32, i32) {
    %c0_i32 = arith.constant 0 : i32
    %c0_i32_0 = arith.constant 0 : i32
    return %arg0, %c0_i32 : i32, i32
  }
  func.func @transform_1(%arg0: i32) -> (i32, i32) {
    %c0_i32 = arith.constant 0 : i32
    %c0_i32_0 = arith.constant 0 : i32
    return %arg0, %c0_i32 : i32, i32
  }
  func.func @transform_2(%arg0: i32) -> (i32, i32) {
    %c0_i32 = arith.constant 0 : i32
    %c0_i32_0 = arith.constant 0 : i32
    return %arg0, %c0_i32 : i32, i32
  }
  func.func @transform_3(%arg0: i32) -> (i32, i32) {
    %c0_i32 = arith.constant 0 : i32
    %c0_i32_0 = arith.constant 0 : i32
    return %arg0, %c0_i32 : i32, i32
  }
}

</mosaic_0001>

<llo_original>
// kernel: _if_impl.1
$region0: #{_if_impl.1}
  #allocation0 [shape = 'u32[]', space=smem, size = 0x4, offset = 0x4, fixed_abs, tag = 'smem constant byte address 0x4 - core index']
  #allocation1 [shape = 'u32[72,128]{1,0:T(1,128)}', space=vmem, size = 0x9000, scoped, tag = 'internal scratch']
  %s0 = inlined_call_operand.vmem [shape: f32[59,512], index: 0, kind: input, shape index: {}]
  %s1 = inlined_call_operand.vmem [shape: f32[59,512], index: 1, kind: input, shape index: {}, may-alias: {1,3}]
  %s2 = inlined_call_operand.vmem [shape: bf16[59,512], index: 2, kind: output, shape index: {0}]
  %s3 = inlined_call_operand.vmem [shape: f32[59,512], index: 3, kind: output, shape index: {1}, may-alias: {1,3}]
  %4 = xla_tuple %s2, %s3
  %s5 = sld [smem:[#allocation0]]
  $region49: #{_if_impl.1} parent=0
    _
  %s7 = ssub.s32 1, %s5
  %s8 = scalar_select 0, %s7, %s5
  loop: start=0, step=1, limit=4
  $region2: #{_if_impl.1} parent=0 // loop_pre_header
    _
  $region3: #{_if_impl.1} parent=0 // loop_header
    %s10 = sphi 0, %s14
    %p11 = scmp.ge.s32.totalorder %s10, 4
    %s20 = sphi 0, %s22
    %s23 = sphi 0, %s20
    %s24 = sphi 0, %s23
    %s40 = sphi 0, %s24
    %s46 = sphi 0, %s48
    %s49 = sphi 0, %s46
    %s50 = sphi 0, %s49
    %s66 = sphi 0, %s50
    %s72 = sphi 0, %s74
    %s75 = sphi 0, %s72
    %s76 = sphi 0, %s75
    %s92 = sphi 0, %s76
    %s98 = sphi 0, %s100
    %s101 = sphi 0, %s98
    %s102 = sphi 0, %s101
    %s118 = sphi 0, %s102
  $region4: #{_if_impl.1} parent=0 // loop_header_branch
    %13 = sbr.rel (%p11) target = $region8
  $region5: #{_if_impl.1} parent=0 // loop_body
    %s15 = ssub.s32 %s10, 1
    %s16 = ssub.s32 %s10, 2
    %s17 = sadd.s32 %s10, 1
    %s18 = ssub.s32 %s10, %s17
    %p19 = scmp.eq.s32.totalorder %s18, 0
    %s21 = sadd.s32 %s20, 1
    %s22 = scalar_select %p19, %s20, %s21
    %p25 = pneg %p19
    %p26 = scmp.eq.s32.totalorder %s10, 1
    %p27 = por %p25, %p26
    %p28 = scmp.ne.s32.totalorder %s20, %s23
    %p29 = scmp.eq.s32.totalorder %s10, 0
    %p30 = por %p28, %p29
    %p31 = scmp.ne.s32.totalorder %s20, %s23
    %p32 = scmp.eq.s32.totalorder %s15, 1
    %p33 = por %p31, %p32
    %p34 = scmp.ne.s32.totalorder %s23, %s24
    %p35 = scmp.eq.s32.totalorder %s15, 0
    %p36 = por %p34, %p35
    %p37 = scmp.ne.s32.totalorder %s23, %s24
    %p38 = scmp.eq.s32.totalorder %s16, 1
    %p39 = por %p37, %p38
    %p41 = scmp.ne.s32.totalorder %s24, %s40
    %p42 = scmp.eq.s32.totalorder %s16, 0
    %p43 = por %p41, %p42
    %s44 = ssub.s32 %s10, %s17
    %p45 = scmp.eq.s32.totalorder %s44, 0
    %s47 = sadd.s32 %s46, 1
    %s48 = scalar_select %p45, %s46, %s47
    %p51 = pneg %p45
    %p52 = scmp.eq.s32.totalorder %s10, 1
    %p53 = por %p51, %p52
    %p54 = scmp.ne.s32.totalorder %s46, %s49
    %p55 = scmp.eq.s32.totalorder %s10, 0
    %p56 = por %p54, %p55
    %p57 = scmp.ne.s32.totalorder %s46, %s49
    %p58 = scmp.eq.s32.totalorder %s15, 1
    %p59 = por %p57, %p58
    %p60 = scmp.ne.s32.totalorder %s49, %s50
    %p61 = scmp.eq.s32.totalorder %s15, 0
    %p62 = por %p60, %p61
    %p63 = scmp.ne.s32.totalorder %s49, %s50
    %p64 = scmp.eq.s32.totalorder %s16, 1
    %p65 = por %p63, %p64
    %p67 = scmp.ne.s32.totalorder %s50, %s66
    %p68 = scmp.eq.s32.totalorder %s16, 0
    %p69 = por %p67, %p68
    %s70 = ssub.s32 %s10, %s17
    %p71 = scmp.eq.s32.totalorder %s70, 0
    %s73 = sadd.s32 %s72, 1
    %s74 = scalar_select %p71, %s72, %s73
    %p77 = pneg %p71
    %p78 = scmp.eq.s32.totalorder %s10, 1
    %p79 = por %p77, %p78
    %p80 = scmp.ne.s32.totalorder %s72, %s75
    %p81 = scmp.eq.s32.totalorder %s10, 0
    %p82 = por %p80, %p81
    %p83 = scmp.ne.s32.totalorder %s72, %s75
    %p84 = scmp.eq.s32.totalorder %s15, 1
    %p85 = por %p83, %p84
    %p86 = scmp.ne.s32.totalorder %s75, %s76
    %p87 = scmp.eq.s32.totalorder %s15, 0
    %p88 = por %p86, %p87
    %p89 = scmp.ne.s32.totalorder %s75, %s76
    %p90 = scmp.eq.s32.totalorder %s16, 1
    %p91 = por %p89, %p90
    %p93 = scmp.ne.s32.totalorder %s76, %s92
    %p94 = scmp.eq.s32.totalorder %s16, 0
    %p95 = por %p93, %p94
    %s96 = ssub.s32 %s10, %s17
    %p97 = scmp.eq.s32.totalorder %s96, 0
    %s99 = sadd.s32 %s98, 1
    %s100 = scalar_select %p97, %s98, %s99
    %p103 = pneg %p97
    %p104 = scmp.eq.s32.totalorder %s10, 1
    %p105 = por %p103, %p104
    %p106 = scmp.ne.s32.totalorder %s98, %s101
    %p107 = scmp.eq.s32.totalorder %s10, 0
    %p108 = por %p106, %p107
    %p109 = scmp.ne.s32.totalorder %s98, %s101
    %p110 = scmp.eq.s32.totalorder %s15, 1
    %p111 = por %p109, %p110
    %p112 = scmp.ne.s32.totalorder %s101, %s102
    %p113 = scmp.eq.s32.totalorder %s15, 0
    %p114 = por %p112, %p113
    %p115 = scmp.ne.s32.totalorder %s101, %s102
    %p116 = scmp.eq.s32.totalorder %s16, 1
    %p117 = por %p115, %p116
    %p119 = scmp.ne.s32.totalorder %s102, %s118
    %p120 = scmp.eq.s32.totalorder %s16, 0
    %p121 = por %p119, %p120
    %p122 = scmp.le.s32.totalorder 1, %s10
    %p123 = scmp.lt.s32.totalorder %s10, 3
    %p124 = pnand %p122, %p123
    %p125 = pneg %p124
    // Predicated region
    $region9: #{_if_impl.1} parent=5 // pred_check
      _
    $region10: #{_if_impl.1} parent=5 // pred_check_branch
      %127 = sbr.rel (%p124) target = $region12
    $region11: #{_if_impl.1} parent=5 // pred_region
      %s128 = ssub.s32 %s10, 1
    $region12: #{_if_impl.1} parent=5 // pred_fallthru
      _
    %p129 = scmp.lt.s32.totalorder %s10, 2
    // Predicated region
    $region13: #{_if_impl.1} parent=5 // pred_check
      %p130 = pneg %p129
    $region14: #{_if_impl.1} parent=5 // pred_check_branch
      %132 = sbr.rel (%p130) target = $region16
    $region15: #{_if_impl.1} parent=5 // pred_region
      // Predicated region
      $region17: #{_if_impl.1} parent=15 // pred_check
        %p133 = pneg %p30
      $region18: #{_if_impl.1} parent=15 // pred_check_branch
        %135 = sbr.rel (%p133) target = $region20
      $region19: #{_if_impl.1} parent=15 // pred_region
        %s136 = smul.u32 4, %s10
        %p137 = scmp.lt.s32.totalorder %s136, 7
        %s138 = scalar_select %p137, %s136, 7
        %s139 = smul.addr %s138, 4
        %s140 = smul.addr %s139, 8
        %s141 = scalar_lea.vmem %s0, %s140
        %s142 = smul.u32 4, %s10
      $region20: #{_if_impl.1} parent=15 // pred_fallthru
        _
      // Predicated region
      $region21: #{_if_impl.1} parent=15 // pred_check
        %p143 = pneg %p56
      $region22: #{_if_impl.1} parent=15 // pred_check_branch
        %145 = sbr.rel (%p143) target = $region24
      $region23: #{_if_impl.1} parent=15 // pred_region
        %s146 = smul.u32 4, %s10
        %p147 = scmp.lt.s32.totalorder %s146, 7
        %s148 = scalar_select %p147, %s146, 7
        %s149 = smul.addr %s148, 4
        %s150 = smul.addr %s149, 8
        %s151 = scalar_lea.vmem %s1, %s150
        %s152 = smul.u32 4, %s10
      $region24: #{_if_impl.1} parent=15 // pred_fallthru
        _
    $region16: #{_if_impl.1} parent=5 // pred_fallthru
      _
    %p153 = scmp.le.s32.totalorder 1, %s10
    %p154 = scmp.lt.s32.totalorder %s10, 3
    %p155 = pnand %p153, %p154
    %p156 = pneg %p155
    // Predicated region
    $region25: #{_if_impl.1} parent=5 // pred_check
      _
    $region26: #{_if_impl.1} parent=5 // pred_check_branch
      %158 = sbr.rel (%p155) target = $region28
    $region27: #{_if_impl.1} parent=5 // pred_region
      %s159 = ssub.s32 %s10, 1
      %s160 = smul.u32 4, %s15
      %p161 = scmp.lt.s32.totalorder %s160, 7
      %s162 = scalar_select %p161, %s160, 7
      %s163 = smul.addr %s162, 4
      %s164 = smul.addr %s163, 8
      %s165 = scalar_lea.vmem %s0, %s164
      %p166 = pneg %p36
      %p167 = pneg %p33
      %s168 = smul.u32 4, %s15
      %p169 = scmp.lt.s32.totalorder %s168, 7
      %s170 = scalar_select %p169, %s168, 7
      %s171 = smul.addr %s170, 4
      %s172 = smul.addr %s171, 8
      %s173 = scalar_lea.vmem %s1, %s172
      %p174 = pneg %p62
      %p175 = pneg %p59
      %p176 = pneg %p88
      %p177 = pneg %p85
      %s178 = smul.u32 4, %s15
      %p179 = scmp.lt.s32.totalorder %s178, 7
      %s180 = scalar_select %p179, %s178, 7
      %s181 = smul.addr %s180, 4
      %s182 = smul.addr %s181, 4
      %s183 = scalar_lea.vmem %s2, %s182
      %p184 = pneg %p114
      %p185 = pneg %p111
      %s186 = smul.u32 4, %s15
      %p187 = scmp.lt.s32.totalorder %s186, 7
      %s188 = scalar_select %p187, %s186, 7
      %s189 = smul.addr %s188, 4
      %s190 = smul.addr %s189, 8
      %s191 = scalar_lea.vmem %s3, %s190
      %s192 = smul.u32 4, %s15
      %p193 = scmp.lt.s32.totalorder %s192, 7
      %s194 = scalar_select %p193, %s192, 7
      %s195 = smul.addr %s194, 4
      %s196 = smul.addr %s195, 8
      %s197 = scalar_lea.vmem %s0, %s196
      %s198 = smul.u32 4, %s15
      %s199 = smul.u32 4, %s15
      %p200 = scmp.lt.s32.totalorder %s199, 7
      %s201 = scalar_select %p200, %s199, 7
      %s202 = smul.addr %s201, 4
      %s203 = smul.addr %s202, 8
      %s204 = scalar_lea.vmem %s1, %s203
      %s205 = smul.u32 4, %s15
      %s206 = smul.u32 4, %s15
      %p207 = scmp.lt.s32.totalorder %s206, 7
      %s208 = scalar_select %p207, %s206, 7
      %s209 = smul.addr %s208, 4
      %s210 = smul.addr %s209, 4
      %s211 = scalar_lea.vmem %s2, %s210
      %s212 = smul.u32 4, %s15
      %s213 = smul.u32 4, %s15
      %p214 = scmp.lt.s32.totalorder %s213, 7
      %s215 = scalar_select %p214, %s213, 7
      %s216 = smul.addr %s215, 4
      %s217 = smul.addr %s216, 8
      %s218 = scalar_lea.vmem %s3, %s217
      %s219 = smul.u32 4, %s15
      %v220 = vld [vmem:[%s204] sm:$0xff]
      %v221 = vld [vmem:[%s204 + $0x8] sm:$0xff]
      %v222 = vld [vmem:[%s204 + $0x10] sm:$0xff]
      %v223 = vld [vmem:[%s204 + $0x18] sm:$0xff]
      %v224 = vld [vmem:[%s204 + $0x20] sm:$0xff]
      %v225 = vld [vmem:[%s204 + $0x28] sm:$0xff]
      %v226 = vld [vmem:[%s204 + $0x30] sm:$0xff]
      %v227 = vld [vmem:[%s204 + $0x38] sm:$0xff]
      %v228 = vld [vmem:[%s204 + $0x40] sm:$0xff]
      %v229 = vld [vmem:[%s204 + $0x48] sm:$0xff]
      %v230 = vld [vmem:[%s204 + $0x50] sm:$0xff]
      %v231 = vld [vmem:[%s204 + $0x58] sm:$0xff]
      %v232 = vld [vmem:[%s204 + $0x60] sm:$0xff]
      %v233 = vld [vmem:[%s204 + $0x68] sm:$0xff]
      %v234 = vld [vmem:[%s204 + $0x70] sm:$0xff]
      %v235 = vld [vmem:[%s204 + $0x78] sm:$0xff]
      %v236 = vld [vmem:[%s197] sm:$0xff]
      %v237 = vld [vmem:[%s197 + $0x8] sm:$0xff]
      %v238 = vld [vmem:[%s197 + $0x10] sm:$0xff]
      %v239 = vld [vmem:[%s197 + $0x18] sm:$0xff]
      %v240 = vld [vmem:[%s197 + $0x20] sm:$0xff]
      %v241 = vld [vmem:[%s197 + $0x28] sm:$0xff]
      %v242 = vld [vmem:[%s197 + $0x30] sm:$0xff]
      %v243 = vld [vmem:[%s197 + $0x38] sm:$0xff]
      %v244 = vld [vmem:[%s197 + $0x40] sm:$0xff]
      %v245 = vld [vmem:[%s197 + $0x48] sm:$0xff]
      %v246 = vld [vmem:[%s197 + $0x50] sm:$0xff]
      %v247 = vld [vmem:[%s197 + $0x58] sm:$0xff]
      %v248 = vld [vmem:[%s197 + $0x60] sm:$0xff]
      %v249 = vld [vmem:[%s197 + $0x68] sm:$0xff]
      %v250 = vld [vmem:[%s197 + $0x70] sm:$0xff]
      %v251 = vld [vmem:[%s197 + $0x78] sm:$0xff]
      %v252 = vadd.f32 %v220, %v236
      %v253 = vadd.f32 %v221, %v237
      %v254 = vadd.f32 %v222, %v238
      %v255 = vadd.f32 %v223, %v239
      %v256 = vadd.f32 %v224, %v240
      %v257 = vadd.f32 %v225, %v241
      %v258 = vadd.f32 %v226, %v242
      %v259 = vadd.f32 %v227, %v243
      %v260 = vadd.f32 %v228, %v244
      %v261 = vadd.f32 %v229, %v245
      %v262 = vadd.f32 %v230, %v246
      %v263 = vadd.f32 %v231, %v247
      %v264 = vadd.f32 %v232, %v248
      %v265 = vadd.f32 %v233, %v249
      %v266 = vadd.f32 %v234, %v250
      %v267 = vadd.f32 %v235, %v251
      %v268 = vsub.f32 %v252, 1.0
      %v269 = vsub.f32 %v253, 1.0
      %v270 = vsub.f32 %v254, 1.0
      %v271 = vsub.f32 %v255, 1.0
      %v272 = vsub.f32 %v256, 1.0
      %v273 = vsub.f32 %v257, 1.0
      %v274 = vsub.f32 %v258, 1.0
      %v275 = vsub.f32 %v259, 1.0
      %v276 = vsub.f32 %v260, 1.0
      %v277 = vsub.f32 %v261, 1.0
      %v278 = vsub.f32 %v262, 1.0
      %v279 = vsub.f32 %v263, 1.0
      %v280 = vsub.f32 %v264, 1.0
      %v281 = vsub.f32 %v265, 1.0
      %v282 = vsub.f32 %v266, 1.0
      %v283 = vsub.f32 %v267, 1.0
      %vm284 = vcmp.gt.f32.partialorder %v268, 0.0
      %vm285 = vcmp.gt.f32.partialorder %v269, 0.0
      %vm286 = vcmp.gt.f32.partialorder %v270, 0.0
      %vm287 = vcmp.gt.f32.partialorder %v271, 0.0
      %vm288 = vcmp.gt.f32.partialorder %v272, 0.0
      %vm289 = vcmp.gt.f32.partialorder %v273, 0.0
      %vm290 = vcmp.gt.f32.partialorder %v274, 0.0
      %vm291 = vcmp.gt.f32.partialorder %v275, 0.0
      %vm292 = vcmp.gt.f32.partialorder %v276, 0.0
      %vm293 = vcmp.gt.f32.partialorder %v277, 0.0
      %vm294 = vcmp.gt.f32.partialorder %v278, 0.0
      %vm295 = vcmp.gt.f32.partialorder %v279, 0.0
      %vm296 = vcmp.gt.f32.partialorder %v280, 0.0
      %vm297 = vcmp.gt.f32.partialorder %v281, 0.0
      %vm298 = vcmp.gt.f32.partialorder %v282, 0.0
      %vm299 = vcmp.gt.f32.partialorder %v283, 0.0
      %v300 = vsel %vm284, 1.0, 0.0
      %v301 = vsel %vm285, 1.0, 0.0
      %v302 = vsel %vm286, 1.0, 0.0
      %v303 = vsel %vm287, 1.0, 0.0
      %v304 = vsel %vm288, 1.0, 0.0
      %v305 = vsel %vm289, 1.0, 0.0
      %v306 = vsel %vm290, 1.0, 0.0
      %v307 = vsel %vm291, 1.0, 0.0
      %v308 = vsel %vm292, 1.0, 0.0
      %v309 = vsel %vm293, 1.0, 0.0
      %v310 = vsel %vm294, 1.0, 0.0
      %v311 = vsel %vm295, 1.0, 0.0
      %v312 = vsel %vm296, 1.0, 0.0
      %v313 = vsel %vm297, 1.0, 0.0
      %v314 = vsel %vm298, 1.0, 0.0
      %v315 = vsel %vm299, 1.0, 0.0
      %v316 = vpack.c.bf16 %v301, %v300
      %v317 = vpack.c.bf16 %v303, %v302
      %v318 = vpack.c.bf16 %v305, %v304
      %v319 = vpack.c.bf16 %v307, %v306
      %v320 = vpack.c.bf16 %v309, %v308
      %v321 = vpack.c.bf16 %v311, %v310
      %v322 = vpack.c.bf16 %v313, %v312
      %v323 = vpack.c.bf16 %v315, %v314
      %324 = vst [vmem:[%s211] sm:$0xff] %v316
      %325 = vst [vmem:[%s211 + $0x8] sm:$0xff] %v317
      %326 = vst [vmem:[%s211 + $0x10] sm:$0xff] %v318
      %327 = vst [vmem:[%s211 + $0x18] sm:$0xff] %v319
      %328 = vst [vmem:[%s211 + $0x20] sm:$0xff] %v320
      %329 = vst [vmem:[%s211 + $0x28] sm:$0xff] %v321
      %330 = vst [vmem:[%s211 + $0x30] sm:$0xff] %v322
      %331 = vst [vmem:[%s211 + $0x38] sm:$0xff] %v323
      %v332 = vsel %vm284, 0.0, %v252
      %v333 = vsel %vm285, 0.0, %v253
      %v334 = vsel %vm286, 0.0, %v254
      %v335 = vsel %vm287, 0.0, %v255
      %v336 = vsel %vm288, 0.0, %v256
      %v337 = vsel %vm289, 0.0, %v257
      %v338 = vsel %vm290, 0.0, %v258
      %v339 = vsel %vm291, 0.0, %v259
      %v340 = vsel %vm292, 0.0, %v260
      %v341 = vsel %vm293, 0.0, %v261
      %v342 = vsel %vm294, 0.0, %v262
      %v343 = vsel %vm295, 0.0, %v263
      %v344 = vsel %vm296, 0.0, %v264
      %v345 = vsel %vm297, 0.0, %v265
      %v346 = vsel %vm298, 0.0, %v266
      %v347 = vsel %vm299, 0.0, %v267
      %348 = vst [vmem:[%s218] sm:$0xff] %v332
      %349 = vst [vmem:[%s218 + $0x8] sm:$0xff] %v333
      %350 = vst [vmem:[%s218 + $0x10] sm:$0xff] %v334
      %351 = vst [vmem:[%s218 + $0x18] sm:$0xff] %v335
      %352 = vst [vmem:[%s218 + $0x20] sm:$0xff] %v336
      %353 = vst [vmem:[%s218 + $0x28] sm:$0xff] %v337
      %354 = vst [vmem:[%s218 + $0x30] sm:$0xff] %v338
      %355 = vst [vmem:[%s218 + $0x38] sm:$0xff] %v339
      %356 = vst [vmem:[%s218 + $0x40] sm:$0xff] %v340
      %357 = vst [vmem:[%s218 + $0x48] sm:$0xff] %v341
      %358 = vst [vmem:[%s218 + $0x50] sm:$0xff] %v342
      %359 = vst [vmem:[%s218 + $0x58] sm:$0xff] %v343
      %360 = vst [vmem:[%s218 + $0x60] sm:$0xff] %v344
      %361 = vst [vmem:[%s218 + $0x68] sm:$0xff] %v345
      %362 = vst [vmem:[%s218 + $0x70] sm:$0xff] %v346
      %363 = vst [vmem:[%s218 + $0x78] sm:$0xff] %v347
      %s364 = smul.u32 4, %s15
      %p365 = scmp.lt.s32.totalorder %s364, 7
      %s366 = scalar_select %p365, %s364, 7
      %s367 = smul.addr %s366, 4
      %s368 = smul.addr %s367, 4
      %s369 = scalar_lea.vmem %s2, %s368
      %s370 = smul.u32 4, %s15
      %p371 = scmp.lt.s32.totalorder %s370, 7
      %s372 = scalar_select %p371, %s370, 7
      %s373 = smul.addr %s372, 4
      %s374 = smul.addr %s373, 8
      %s375 = scalar_lea.vmem %s3, %s374
      // Predicated region
      $region29: #{_if_impl.1} parent=27 // pred_check
        %p376 = pneg %p85
      $region30: #{_if_impl.1} parent=27 // pred_check_branch
        %378 = sbr.rel (%p376) target = $region32
      $region31: #{_if_impl.1} parent=27 // pred_region
        %s379 = smul.u32 4, %s15
      $region32: #{_if_impl.1} parent=27 // pred_fallthru
        _
      // Predicated region
      $region33: #{_if_impl.1} parent=27 // pred_check
        %p380 = pneg %p111
      $region34: #{_if_impl.1} parent=27 // pred_check_branch
        %382 = sbr.rel (%p380) target = $region36
      $region35: #{_if_impl.1} parent=27 // pred_region
        %s383 = smul.u32 4, %s15
      $region36: #{_if_impl.1} parent=27 // pred_fallthru
        _
    $region28: #{_if_impl.1} parent=5 // pred_fallthru
      _
    %p384 = scmp.le.s32.totalorder 2, %s10
    // Predicated region
    $region37: #{_if_impl.1} parent=5 // pred_check
      %p385 = pneg %p384
    $region38: #{_if_impl.1} parent=5 // pred_check_branch
      %387 = sbr.rel (%p385) target = $region40
    $region39: #{_if_impl.1} parent=5 // pred_region
      %s388 = ssub.s32 %s10, 2
      // Predicated region
      $region41: #{_if_impl.1} parent=39 // pred_check
        %p389 = pneg %p91
      $region42: #{_if_impl.1} parent=39 // pred_check_branch
        %391 = sbr.rel (%p389) target = $region44
      $region43: #{_if_impl.1} parent=39 // pred_region
        %s392 = smul.u32 4, %s16
        %p393 = scmp.lt.s32.totalorder %s392, 7
        %s394 = scalar_select %p393, %s392, 7
        %s395 = smul.addr %s394, 4
        %s396 = smul.addr %s395, 4
        %s397 = scalar_lea.vmem %s2, %s396
      $region44: #{_if_impl.1} parent=39 // pred_fallthru
        _
      // Predicated region
      $region45: #{_if_impl.1} parent=39 // pred_check
        %p398 = pneg %p117
      $region46: #{_if_impl.1} parent=39 // pred_check_branch
        %400 = sbr.rel (%p398) target = $region48
      $region47: #{_if_impl.1} parent=39 // pred_region
        %s401 = smul.u32 4, %s16
        %p402 = scmp.lt.s32.totalorder %s401, 7
        %s403 = scalar_select %p402, %s401, 7
        %s404 = smul.addr %s403, 4
        %s405 = smul.addr %s404, 8
        %s406 = scalar_lea.vmem %s3, %s405
      $region48: #{_if_impl.1} parent=39 // pred_fallthru
        _
    $region40: #{_if_impl.1} parent=5 // pred_fallthru
      _
  $region6: #{_if_impl.1} parent=0 // loop_footer
    %s14 = sadd.s32 1, %s10
  $region7: #{_if_impl.1} parent=0 // loop_footer_branch
    %9 = sbr.rel target = $region3
  $region8: #{_if_impl.1} parent=0 // loop_exit
    _

</llo_original>
